<compile_context>
chip_gen: v5e
topology: v5e:2x2
jax: 0.10.0
libtpu: 0.0.40
codegen_flags: <defaults>
</compile_context>

<pallas_src>
import functools

import jax
import jax.numpy as jnp
from jax.experimental import pallas as pl
from jax.experimental.pallas import tpu as pltpu


def _round_up(x, m):
    return ((x + m - 1) // m) * m


def _silu(x):
    # logistic goes to the EUP slot; the mul stays on the VPU.
    return x * jax.nn.sigmoid(x)


def shared_actor_critic_kernel(
    obs_ref,
    w1_ref, b1_ref,
    w2_ref, b2_ref,
    w3_ref, b3_ref,
    wh_ref, bh_ref,          # fused actor|critic head, lane-padded: (H, HP), (1, HP)
    out_ref,                 # packed lane-dense slab: (TB, 2*HP)
    *, n_actions, head_pad,
):
    # --- encoder: Linear -> SiLU, three times (bf16 operands, f32 MXU accumulate) ---
    x = obs_ref[...].astype(jnp.bfloat16)
    h = _silu(jnp.dot(x, w1_ref[...], preferred_element_type=jnp.float32) + b1_ref[...])
    h = _silu(jnp.dot(h.astype(jnp.bfloat16), w2_ref[...],
                      preferred_element_type=jnp.float32) + b2_ref[...])
    z = _silu(jnp.dot(h.astype(jnp.bfloat16), w3_ref[...],
                      preferred_element_type=jnp.float32) + b3_ref[...])

    # --- fused actor + critic heads: one lane-dense matmul, one bias add ---
    # heads columns: [0:A] actor logits, [A] critic value, [A+1:HP] zero pad (from wrapper).
    heads = jnp.dot(z.astype(jnp.bfloat16), wh_ref[...],
                    preferred_element_type=jnp.float32) + bh_ref[...]

    # --- Categorical(logits) normalization: stable logsumexp over the valid columns ---
    col = jax.lax.broadcasted_iota(jnp.int32, heads.shape, 1)
    masked = jnp.where(col < n_actions, heads, -jnp.inf)
    m = jnp.max(masked, axis=-1, keepdims=True)
    lse = m + jnp.log(jnp.sum(jnp.exp(masked - m), axis=-1, keepdims=True))

    # --- two unmasked, 128-aligned stores; wrapper slices out the pieces ---
    out_ref[:, :head_pad] = heads              # logits in [:A], value at column A
    out_ref[:, head_pad:] = heads - lse        # log_probs valid in [:A]; rest discarded


def prepare_params(params, *, weight_dtype=jnp.bfloat16):
    """One-time (per-update) param prep: fuse + lane-pad heads, cast weights to bf16,
    reshape biases to (1, out) lane layout. Keep the result around across forward calls."""
    obs_size, H = params["w1"].shape
    A = params["wa"].shape[1]
    head_pad = _round_up(A + 1, 128)

    w_head = jnp.concatenate([params["wa"], params["wc"]], axis=1)          # (H, A+1)
    w_head = jnp.pad(w_head, ((0, 0), (0, head_pad - (A + 1))))             # (H, HP)
    b_head = jnp.concatenate([params["ba"], params["bc"]])                  # (A+1,)
    b_head = jnp.pad(b_head, (0, head_pad - (A + 1)))[None, :]              # (1, HP)

    return dict(
        w1=params["w1"].astype(weight_dtype), b1=params["b1"][None, :].astype(jnp.float32),
        w2=params["w2"].astype(weight_dtype), b2=params["b2"][None, :].astype(jnp.float32),
        w3=params["w3"].astype(weight_dtype), b3=params["b3"][None, :].astype(jnp.float32),
        wh=w_head.astype(weight_dtype),       bh=b_head.astype(jnp.float32),
        obs_size=obs_size, hidden=H, n_actions=A, head_pad=head_pad,
    )


def shared_actor_critic_forward(obs, prep, *, block_b=256):
    """Returns (pi_logits, pi_log_probs, v) mirroring (Categorical(logits=pi_logits),
    v.squeeze(-1)) from the PyTorch module."""
    B, obs_size = obs.shape
    assert obs_size == prep["obs_size"]
    H, A, head_pad = prep["hidden"], prep["n_actions"], prep["head_pad"]
    out_w = 2 * head_pad

    # --- batch tiling: sublane-aligned, and >= 2 tiles when B >= 16 (v7x megacore) ---
    if B >= 16:
        tb = min(block_b, _round_up(-(-B // 2), 8))
    else:
        tb = _round_up(max(B, 1), 8)
    b_pad = _round_up(B, tb)
    # Only pad when needed (avoids an extra HBM round trip over obs). Padded rows push
    # zero observations through the net: finite everywhere (logsumexp over finite
    # logits), and sliced away below -- do NOT turn them into -inf/NaN paths.
    obs_p = obs if b_pad == B else jnp.pad(obs, ((0, b_pad - B), (0, 0)))
    grid = (b_pad // tb,)

    batch_map = lambda i: (i, 0)   # tiled over batch
    const_map = lambda i: (0, 0)   # weights/biases: VMEM-resident across grid steps

    const_spec = lambda shape: pl.BlockSpec(shape, const_map, pipeline_mode=pl.Buffered(1))
    in_specs = [
        pl.BlockSpec((tb, obs_size), batch_map),
        const_spec((obs_size, H)), const_spec((1, H)),
        const_spec((H, H)),        const_spec((1, H)),
        const_spec((H, H)),        const_spec((1, H)),
        const_spec((H, head_pad)), const_spec((1, head_pad)),
    ]
    out_spec = pl.BlockSpec((tb, out_w), batch_map)

    # --- explicit VMEM budget: single-buffered bf16 weights + double-buffered I/O tiles ---
    w_bytes = (obs_size * H + 2 * H * H + H * head_pad) * 2
    b_bytes = (3 * H + head_pad) * 4
    io_bytes = 2 * (tb * obs_size * obs_p.dtype.itemsize + tb * out_w * 4)
    act_bytes = 4 * tb * H * 4 + 2 * tb * head_pad * 4
    vmem_limit = int(1.5 * (w_bytes + b_bytes + io_bytes + act_bytes)) + (1 << 20)
    vmem_limit = min(max(vmem_limit, 4 << 20), 64 << 20)   # stay within v7x physical VMEM

    cost = pl.CostEstimate(
        flops=2 * b_pad * (obs_size * H + 2 * H * H + H * head_pad),
        transcendentals=3 * b_pad * H + b_pad * head_pad,
        bytes_accessed=obs_p.size * obs_p.dtype.itemsize + w_bytes + b_bytes
                       + b_pad * out_w * 4,
    )

    out = pl.pallas_call(
        functools.partial(shared_actor_critic_kernel, n_actions=A, head_pad=head_pad),
        out_shape=jax.ShapeDtypeStruct((b_pad, out_w), jnp.float32),
        grid=grid,
        in_specs=in_specs,
        out_specs=out_spec,
        compiler_params=pltpu.CompilerParams(
            dimension_semantics=("parallel",),   # shards batch tiles across TCs on v7x
            vmem_limit_bytes=vmem_limit),
        cost_estimate=cost,
    )(obs_p, prep["w1"], prep["b1"], prep["w2"], prep["b2"],
      prep["w3"], prep["b3"], prep["wh"], prep["bh"])

    logits = out[:B, :A]
    log_probs = out[:B, head_pad:head_pad + A]
    v = out[:B, A]
    return logits, log_probs, v


def init_params(key, obs_size, hidden_size, n_actions):
    """Deterministic init matching nn.Linear's U(-1/sqrt(fan_in), 1/sqrt(fan_in)).
    Weights are stored as (in_features, out_features)."""
    def linear(key, fan_in, fan_out):
        kw, kb = jax.random.split(key)
        bound = 1.0 / jnp.sqrt(fan_in)
        w = jax.random.uniform(kw, (fan_in, fan_out), jnp.float32, -bound, bound)
        b = jax.random.uniform(kb, (fan_out,), jnp.float32, -bound, bound)
        return w, b

    k1, k2, k3, ka, kc = jax.random.split(key, 5)
    w1, b1 = linear(k1, obs_size, hidden_size)
    w2, b2 = linear(k2, hidden_size, hidden_size)
    w3, b3 = linear(k3, hidden_size, hidden_size)
    wa, ba = linear(ka, hidden_size, n_actions)
    wc, bc = linear(kc, hidden_size, 1)
    return dict(w1=w1, b1=b1, w2=w2, b2=b2, w3=w3, b3=b3,
                wa=wa, ba=ba, wc=wc, bc=bc)


def _reference(obs, p):
    """Pure-JAX reference mirroring the kernel's bf16-operand / f32-accumulate matmuls."""
    def mm(x, w):
        return jnp.dot(x.astype(jnp.bfloat16), w.astype(jnp.bfloat16),
                       preferred_element_type=jnp.float32)
    h = jax.nn.silu(mm(obs, p["w1"]) + p["b1"])
    h = jax.nn.silu(mm(h, p["w2"]) + p["b2"])
    z = jax.nn.silu(mm(h, p["w3"]) + p["b3"])
    logits = mm(z, p["wa"]) + p["ba"]
    log_probs = logits - jax.nn.logsumexp(logits, axis=-1, keepdims=True)
    v = (mm(z, p["wc"]) + p["bc"]).squeeze(-1)
    return logits, log_probs, v


if __name__ == "__main__":
    obs_size, hidden_size, n_actions, batch = 16, 32, 8, 8

    key = jax.random.PRNGKey(0)
    k_params, k_obs = jax.random.split(key)
    params = init_params(k_params, obs_size, hidden_size, n_actions)
    obs = jax.random.normal(k_obs, (batch, obs_size), jnp.float32)

    prep = prepare_params(params)                       # hoisted out of the hot path
    logits, log_probs, v = shared_actor_critic_forward(obs, prep)
    jax.block_until_ready((logits, log_probs, v))

    ref_logits, ref_log_probs, ref_v = _reference(obs, params)
    assert logits.shape == (batch, n_actions)
    assert log_probs.shape == (batch, n_actions)
    assert v.shape == (batch,)
    # bf16 operands -> compare against the bf16-mirroring reference with a bf16 tolerance.
    assert jnp.allclose(logits, ref_logits, atol=1e-2, rtol=1e-2)
    assert jnp.allclose(log_probs, ref_log_probs, atol=1e-2, rtol=1e-2)
    assert jnp.allclose(v, ref_v, atol=1e-2, rtol=1e-2)

    print("KERNEL_OK")
</pallas_src>

<mosaic_0001>
module attributes {stable_mosaic.version = 11 : i64} {
  func.func @shared_actor_critic_kernel(%arg0: i32, %arg1: memref<8x16xf32, #tpu.memory_space<vmem>>, %arg2: memref<16x32xbf16, #tpu.memory_space<vmem>>, %arg3: memref<1x32xf32, #tpu.memory_space<vmem>>, %arg4: memref<32x32xbf16, #tpu.memory_space<vmem>>, %arg5: memref<1x32xf32, #tpu.memory_space<vmem>>, %arg6: memref<32x32xbf16, #tpu.memory_space<vmem>>, %arg7: memref<1x32xf32, #tpu.memory_space<vmem>>, %arg8: memref<32x128xbf16, #tpu.memory_space<vmem>>, %arg9: memref<1x128xf32, #tpu.memory_space<vmem>>, %arg10: memref<8x256xf32, #tpu.memory_space<vmem>>) attributes {dimension_semantics = [#tpu.dimension_semantics<parallel>], iteration_bounds = array<i64: 1>, scalar_prefetch = 0 : i64, scratch_operands = 0 : i64, tpu.core_type = #tpu.core_type<tc>, window_params = [{transform_indices = @transform_0, window_bounds = array<i64: 8, 16>}, {pipeline_mode = #tpu.pipeline_mode<synchronous>, transform_indices = @transform_1, window_bounds = array<i64: 16, 32>}, {pipeline_mode = #tpu.pipeline_mode<synchronous>, transform_indices = @transform_2, window_bounds = array<i64: 1, 32>}, {pipeline_mode = #tpu.pipeline_mode<synchronous>, transform_indices = @transform_3, window_bounds = array<i64: 32, 32>}, {pipeline_mode = #tpu.pipeline_mode<synchronous>, transform_indices = @transform_4, window_bounds = array<i64: 1, 32>}, {pipeline_mode = #tpu.pipeline_mode<synchronous>, transform_indices = @transform_5, window_bounds = array<i64: 32, 32>}, {pipeline_mode = #tpu.pipeline_mode<synchronous>, transform_indices = @transform_6, window_bounds = array<i64: 1, 32>}, {pipeline_mode = #tpu.pipeline_mode<synchronous>, transform_indices = @transform_7, window_bounds = array<i64: 32, 128>}, {pipeline_mode = #tpu.pipeline_mode<synchronous>, transform_indices = @transform_8, window_bounds = array<i64: 1, 128>}, {transform_indices = @transform_9, window_bounds = array<i64: 8, 256>}]} {
    %c0 = arith.constant 0 : index
    %c0_0 = arith.constant 0 : index
    %0 = vector.load %arg1[%c0, %c0_0] : memref<8x16xf32, #tpu.memory_space<vmem>>, vector<8x16xf32>
    %1 = arith.truncf %0 : vector<8x16xf32> to vector<8x16xbf16>
    %c0_1 = arith.constant 0 : index
    %c0_2 = arith.constant 0 : index
    %2 = vector.load %arg2[%c0_1, %c0_2] : memref<16x32xbf16, #tpu.memory_space<vmem>>, vector<16x32xbf16>
    %cst = arith.constant dense<0.000000e+00> : vector<8x32xf32>
    %3 = tpu.matmul %1, %2, %cst {dimension_numbers = #tpu.dot_dimension_numbers<[1], [0], [0], [1], [0, 0, 1, 1], [], []>} : vector<8x16xbf16>, vector<16x32xbf16>, vector<8x32xf32> -> vector<8x32xf32>
    %c0_3 = arith.constant 0 : index
    %c0_4 = arith.constant 0 : index
    %4 = vector.load %arg3[%c0_3, %c0_4] : memref<1x32xf32, #tpu.memory_space<vmem>>, vector<1x32xf32>
    %5 = vector.broadcast %4 : vector<1x32xf32> to vector<8x32xf32>
    %6 = arith.addf %3, %5 : vector<8x32xf32>
    %7 = arith.negf %6 : vector<8x32xf32>
    %8 = math.exp %7 : vector<8x32xf32>
    %cst_5 = arith.constant 1.000000e+00 : f32
    %9 = vector.broadcast %cst_5 : f32 to vector<8x32xf32>
    %10 = arith.addf %9, %8 : vector<8x32xf32>
    %11 = arith.divf %9, %10 : vector<8x32xf32>
    %12 = arith.mulf %6, %11 : vector<8x32xf32>
    %13 = arith.truncf %12 : vector<8x32xf32> to vector<8x32xbf16>
    %c0_6 = arith.constant 0 : index
    %c0_7 = arith.constant 0 : index
    %14 = vector.load %arg4[%c0_6, %c0_7] : memref<32x32xbf16, #tpu.memory_space<vmem>>, vector<32x32xbf16>
    %cst_8 = arith.constant dense<0.000000e+00> : vector<8x32xf32>
    %15 = tpu.matmul %13, %14, %cst_8 {dimension_numbers = #tpu.dot_dimension_numbers<[1], [0], [0], [1], [0, 0, 1, 1], [], []>} : vector<8x32xbf16>, vector<32x32xbf16>, vector<8x32xf32> -> vector<8x32xf32>
    %c0_9 = arith.constant 0 : index
    %c0_10 = arith.constant 0 : index
    %16 = vector.load %arg5[%c0_9, %c0_10] : memref<1x32xf32, #tpu.memory_space<vmem>>, vector<1x32xf32>
    %17 = vector.broadcast %16 : vector<1x32xf32> to vector<8x32xf32>
    %18 = arith.addf %15, %17 : vector<8x32xf32>
    %19 = arith.negf %18 : vector<8x32xf32>
    %20 = math.exp %19 : vector<8x32xf32>
    %cst_11 = arith.constant 1.000000e+00 : f32
    %21 = vector.broadcast %cst_11 : f32 to vector<8x32xf32>
    %22 = arith.addf %21, %20 : vector<8x32xf32>
    %23 = arith.divf %21, %22 : vector<8x32xf32>
    %24 = arith.mulf %18, %23 : vector<8x32xf32>
    %25 = arith.truncf %24 : vector<8x32xf32> to vector<8x32xbf16>
    %c0_12 = arith.constant 0 : index
    %c0_13 = arith.constant 0 : index
    %26 = vector.load %arg6[%c0_12, %c0_13] : memref<32x32xbf16, #tpu.memory_space<vmem>>, vector<32x32xbf16>
    %cst_14 = arith.constant dense<0.000000e+00> : vector<8x32xf32>
    %27 = tpu.matmul %25, %26, %cst_14 {dimension_numbers = #tpu.dot_dimension_numbers<[1], [0], [0], [1], [0, 0, 1, 1], [], []>} : vector<8x32xbf16>, vector<32x32xbf16>, vector<8x32xf32> -> vector<8x32xf32>
    %c0_15 = arith.constant 0 : index
    %c0_16 = arith.constant 0 : index
    %28 = vector.load %arg7[%c0_15, %c0_16] : memref<1x32xf32, #tpu.memory_space<vmem>>, vector<1x32xf32>
    %29 = vector.broadcast %28 : vector<1x32xf32> to vector<8x32xf32>
    %30 = arith.addf %27, %29 : vector<8x32xf32>
    %31 = arith.negf %30 : vector<8x32xf32>
    %32 = math.exp %31 : vector<8x32xf32>
    %cst_17 = arith.constant 1.000000e+00 : f32
    %33 = vector.broadcast %cst_17 : f32 to vector<8x32xf32>
    %34 = arith.addf %33, %32 : vector<8x32xf32>
    %35 = arith.divf %33, %34 : vector<8x32xf32>
    %36 = arith.mulf %30, %35 : vector<8x32xf32>
    %37 = arith.truncf %36 : vector<8x32xf32> to vector<8x32xbf16>
    %c0_18 = arith.constant 0 : index
    %c0_19 = arith.constant 0 : index
    %38 = vector.load %arg8[%c0_18, %c0_19] : memref<32x128xbf16, #tpu.memory_space<vmem>>, vector<32x128xbf16>
    %cst_20 = arith.constant dense<0.000000e+00> : vector<8x128xf32>
    %39 = tpu.matmul %37, %38, %cst_20 {dimension_numbers = #tpu.dot_dimension_numbers<[1], [0], [0], [1], [0, 0, 1, 1], [], []>} : vector<8x32xbf16>, vector<32x128xbf16>, vector<8x128xf32> -> vector<8x128xf32>
    %c0_21 = arith.constant 0 : index
    %c0_22 = arith.constant 0 : index
    %40 = vector.load %arg9[%c0_21, %c0_22] : memref<1x128xf32, #tpu.memory_space<vmem>>, vector<1x128xf32>
    %41 = vector.broadcast %40 : vector<1x128xf32> to vector<8x128xf32>
    %42 = arith.addf %39, %41 : vector<8x128xf32>
    %43 = tpu.iota {dimensions = array<i32: 1>} : vector<8x128xi32>
    %c8_i32 = arith.constant 8 : i32
    %44 = vector.broadcast %c8_i32 : i32 to vector<8x128xi32>
    %45 = arith.cmpi slt, %43, %44 : vector<8x128xi32>
    %cst_23 = arith.constant 0xFF800000 : f32
    %46 = vector.broadcast %cst_23 : f32 to vector<8x128xf32>
    %47 = arith.select %45, %42, %46 : vector<8x128xi1>, vector<8x128xf32>
    %cst_24 = arith.constant dense<0xFF800000> : vector<8xf32>
    %48 = vector.multi_reduction <maximumf>, %47, %cst_24 [1] : vector<8x128xf32> to vector<8xf32>
    %49 = vector.shape_cast %48 : vector<8xf32> to vector<8x1xf32>
    %50 = vector.broadcast %49 : vector<8x1xf32> to vector<8x128xf32>
    %51 = arith.subf %47, %50 : vector<8x128xf32>
    %52 = math.exp %51 : vector<8x128xf32>
    %cst_25 = arith.constant dense<0.000000e+00> : vector<8xf32>
    %53 = vector.multi_reduction <add>, %52, %cst_25 [1] : vector<8x128xf32> to vector<8xf32>
    %54 = vector.shape_cast %53 : vector<8xf32> to vector<8x1xf32>
    %55 = math.log %54 : vector<8x1xf32>
    %56 = arith.addf %49, %55 : vector<8x1xf32>
    %c0_26 = arith.constant 0 : index
    %c0_27 = arith.constant 0 : index
    %57 = vector.load %arg10[%c0_26, %c0_27] : memref<8x256xf32, #tpu.memory_space<vmem>>, vector<8x128xf32>
    tpu.vector_store %arg10[%c0_26, %c0_27], %42 {strides = array<i32>} : memref<8x256xf32, #tpu.memory_space<vmem>>, vector<8x128xf32>,
    %58 = vector.broadcast %56 : vector<8x1xf32> to vector<8x128xf32>
    %59 = arith.subf %42, %58 : vector<8x128xf32>
    %c0_28 = arith.constant 0 : index
    %c128 = arith.constant 128 : index
    %60 = vector.load %arg10[%c0_28, %c128] : memref<8x256xf32, #tpu.memory_space<vmem>>, vector<8x128xf32>
    tpu.vector_store %arg10[%c0_28, %c128], %59 {strides = array<i32>} : memref<8x256xf32, #tpu.memory_space<vmem>>, vector<8x128xf32>,
    return
  }
  func.func @transform_0(%arg0: i32) -> (i32, i32) {
    %c0_i32 = arith.constant 0 : i32
    %c0_i32_0 = arith.constant 0 : i32
    return %arg0, %c0_i32 : i32, i32
  }
  func.func @transform_1(%arg0: i32) -> (i32, i32) {
    %c0_i32 = arith.constant 0 : i32
    %c0_i32_0 = arith.constant 0 : i32
    %c0_i32_1 = arith.constant 0 : i32
    return %c0_i32, %c0_i32_0 : i32, i32
  }
  func.func @transform_2(%arg0: i32) -> (i32, i32) {
    %c0_i32 = arith.constant 0 : i32
    %c0_i32_0 = arith.constant 0 : i32
    %c0_i32_1 = arith.constant 0 : i32
    return %c0_i32, %c0_i32_0 : i32, i32
  }
  func.func @transform_3(%arg0: i32) -> (i32, i32) {
    %c0_i32 = arith.constant 0 : i32
    %c0_i32_0 = arith.constant 0 : i32
    %c0_i32_1 = arith.constant 0 : i32
    return %c0_i32, %c0_i32_0 : i32, i32
  }
  func.func @transform_4(%arg0: i32) -> (i32, i32) {
    %c0_i32 = arith.constant 0 : i32
    %c0_i32_0 = arith.constant 0 : i32
    %c0_i32_1 = arith.constant 0 : i32
    return %c0_i32, %c0_i32_0 : i32, i32
  }
  func.func @transform_5(%arg0: i32) -> (i32, i32) {
    %c0_i32 = arith.constant 0 : i32
    %c0_i32_0 = arith.constant 0 : i32
    %c0_i32_1 = arith.constant 0 : i32
    return %c0_i32, %c0_i32_0 : i32, i32
  }
  func.func @transform_6(%arg0: i32) -> (i32, i32) {
    %c0_i32 = arith.constant 0 : i32
    %c0_i32_0 = arith.constant 0 : i32
    %c0_i32_1 = arith.constant 0 : i32
    return %c0_i32, %c0_i32_0 : i32, i32
  }
  func.func @transform_7(%arg0: i32) -> (i32, i32) {
    %c0_i32 = arith.constant 0 : i32
    %c0_i32_0 = arith.constant 0 : i32
    %c0_i32_1 = arith.constant 0 : i32
    return %c0_i32, %c0_i32_0 : i32, i32
  }
  func.func @transform_8(%arg0: i32) -> (i32, i32) {
    %c0_i32 = arith.constant 0 : i32
    %c0_i32_0 = arith.constant 0 : i32
    %c0_i32_1 = arith.constant 0 : i32
    return %c0_i32, %c0_i32_0 : i32, i32
  }
  func.func @transform_9(%arg0: i32) -> (i32, i32) {
    %c0_i32 = arith.constant 0 : i32
    %c0_i32_0 = arith.constant 0 : i32
    return %arg0, %c0_i32 : i32, i32
  }
}

</mosaic_0001>

<llo_original>
// kernel: tpu_custom_call.1
$region0: #{tpu_custom_call.1}
  #allocation0 [shape = 'u32[]', space=smem, size = 0x4, offset = 0x4, fixed_abs, tag = 'smem constant byte address 0x4 - core index']
  #allocation1 [shape = 'u32[72,128]{1,0:T(1,128)}', space=vmem, size = 0x9000, scoped, tag = 'internal scratch']
  %s0 = inlined_call_operand.hbm [shape: f32[8,16], index: 0, kind: input, shape index: {}]
  %s1 = inlined_call_operand.hbm [shape: bf16[16,32], index: 1, kind: input, shape index: {}]
  %s2 = inlined_call_operand.vmem [shape: f32[1,32], index: 2, kind: input, shape index: {}]
  %s3 = inlined_call_operand.hbm [shape: bf16[32,32], index: 3, kind: input, shape index: {}]
  %s4 = inlined_call_operand.vmem [shape: f32[1,32], index: 4, kind: input, shape index: {}]
  %s5 = inlined_call_operand.hbm [shape: bf16[32,32], index: 5, kind: input, shape index: {}]
  %s6 = inlined_call_operand.vmem [shape: f32[1,32], index: 6, kind: input, shape index: {}]
  %s7 = inlined_call_operand.hbm [shape: bf16[32,128], index: 7, kind: input, shape index: {}]
  %s8 = inlined_call_operand.vmem [shape: f32[1,128], index: 8, kind: input, shape index: {}]
  %s9 = inlined_call_operand.hbm [shape: f32[8,256], index: 9, kind: output, shape index: {}]
  %s10 = sld [smem:[#allocation0]]
  $region66: #{tpu_custom_call.1} parent=0
    _
  %s12 = ssub.s32 1, %s10
  %s13 = scalar_select 0, %s12, %s10
  $region1: #{tpu_custom_call.1} parent=0
    #allocation2 [shape = 'u8[4096]{0}', space=vmem, size = 0x1000, scoped, tag = 'input window, operand 0, single buffered']
    #allocation3 [shape = 's32[1]{0}', space=sflag, size = 0x4, scoped, tag = 'scoped memory for tpu_custom_call.1']
    #allocation4 [shape = 's32[1]{0}', space=sflag, size = 0x4, scoped, tag = 'scoped memory for tpu_custom_call.1']
    #allocation5 [shape = 'u8[4096]{0}', space=vmem, size = 0x1000, scoped, tag = 'input window, operand 1, single buffered']
    #allocation6 [shape = 's32[1]{0}', space=sflag, size = 0x4, scoped, tag = 'scoped memory for tpu_custom_call.1']
    #allocation7 [shape = 'u8[8192]{0}', space=vmem, size = 0x2000, scoped, tag = 'input window, operand 3, single buffered']
    #allocation8 [shape = 'u8[8192]{0}', space=vmem, size = 0x2000, scoped, tag = 'input window, operand 5, single buffered']
    #allocation9 [shape = 's32[1]{0}', space=sflag, size = 0x4, scoped, tag = 'scoped memory for tpu_custom_call.1']
    #allocation10 [shape = 'u8[8192]{0}', space=vmem, size = 0x2000, scoped, tag = 'input window, operand 7, single buffered']
    #allocation11 [shape = 'u8[8192]{0}', space=vmem, size = 0x2000, scoped, tag = 'output window, operand 0, single buffered']
    %14 = vsyncpa [#allocation3], 0
    %15 = vsyncpa [#allocation6], 0
    %16 = vsyncpa [#allocation9], 0
    %17 = vsyncpa [#allocation4], 0
    // Predicated region
    $region2: #{tpu_custom_call.1} parent=1 // pred_check
      _
    $region3: #{tpu_custom_call.1} parent=1 // pred_check_branch
      %19 = sbr.rel (0) target = $region5
    $region4: #{tpu_custom_call.1} parent=1 // pred_region
      %21 = vsyncadd [#allocation3], 0
      %s23 = sshll.u32 %s0, 4
      %s24 = int_to_ptr.hbm [resolvable:$true] %s23
      %s25 = sshll.u32 [#allocation2], 4
      %s26 = int_to_ptr.vmem [resolvable:$true] %s25
      %28 = dma.hbm_to_vmem [thread:$0]  %s24, 128, %s26, [#allocation3]
    $region5: #{tpu_custom_call.1} parent=1 // pred_fallthru
      _
    // Predicated region
    $region6: #{tpu_custom_call.1} parent=1 // pred_check
      _
    $region7: #{tpu_custom_call.1} parent=1 // pred_check_branch
      %30 = sbr.rel (0) target = $region9
    $region8: #{tpu_custom_call.1} parent=1 // pred_region
      %32 = vsyncadd [#allocation6], 0
      %s33 = sshll.u32 %s1, 4
      %s34 = int_to_ptr.hbm [resolvable:$true] %s33
      %s35 = sshll.u32 [#allocation5], 4
      %s36 = int_to_ptr.vmem [resolvable:$true] %s35
      %41 = dma.hbm_to_vmem [thread:$0]  %s34, 128, %s36, [#allocation6], 64, 64, 4
    $region9: #{tpu_custom_call.1} parent=1 // pred_fallthru
      _
    // Predicated region
    $region10: #{tpu_custom_call.1} parent=1 // pred_check
      _
    $region11: #{tpu_custom_call.1} parent=1 // pred_check_branch
      %43 = sbr.rel (0) target = $region13
    $region12: #{tpu_custom_call.1} parent=1 // pred_region
      _
    $region13: #{tpu_custom_call.1} parent=1 // pred_fallthru
      _
    // Predicated region
    $region14: #{tpu_custom_call.1} parent=1 // pred_check
      _
    $region15: #{tpu_custom_call.1} parent=1 // pred_check_branch
      %45 = sbr.rel (0) target = $region17
    $region16: #{tpu_custom_call.1} parent=1 // pred_region
      %47 = vsyncadd [#allocation6], 0
      %s48 = sshll.u32 %s3, 4
      %s49 = int_to_ptr.hbm [resolvable:$true] %s48
      %s50 = sshll.u32 [#allocation7], 4
      %s51 = int_to_ptr.vmem [resolvable:$true] %s50
      %56 = dma.hbm_to_vmem [thread:$0]  %s49, 256, %s51, [#allocation6], 64, 64, 4
    $region17: #{tpu_custom_call.1} parent=1 // pred_fallthru
      _
    // Predicated region
    $region18: #{tpu_custom_call.1} parent=1 // pred_check
      _
    $region19: #{tpu_custom_call.1} parent=1 // pred_check_branch
      %58 = sbr.rel (0) target = $region21
    $region20: #{tpu_custom_call.1} parent=1 // pred_region
      _
    $region21: #{tpu_custom_call.1} parent=1 // pred_fallthru
      _
    // Predicated region
    $region22: #{tpu_custom_call.1} parent=1 // pred_check
      _
    $region23: #{tpu_custom_call.1} parent=1 // pred_check_branch
      %60 = sbr.rel (0) target = $region25
    $region24: #{tpu_custom_call.1} parent=1 // pred_region
      %62 = vsyncadd [#allocation9], 0
      %s63 = sshll.u32 %s5, 4
      %s64 = int_to_ptr.hbm [resolvable:$true] %s63
      %s65 = sshll.u32 [#allocation8], 4
      %s66 = int_to_ptr.vmem [resolvable:$true] %s65
      %71 = dma.hbm_to_vmem [thread:$0]  %s64, 256, %s66, [#allocation9], 64, 64, 4
    $region25: #{tpu_custom_call.1} parent=1 // pred_fallthru
      _
    // Predicated region
    $region26: #{tpu_custom_call.1} parent=1 // pred_check
      _
    $region27: #{tpu_custom_call.1} parent=1 // pred_check_branch
      %73 = sbr.rel (0) target = $region29
    $region28: #{tpu_custom_call.1} parent=1 // pred_region
      _
    $region29: #{tpu_custom_call.1} parent=1 // pred_fallthru
      _
    // Predicated region
    $region30: #{tpu_custom_call.1} parent=1 // pred_check
      _
    $region31: #{tpu_custom_call.1} parent=1 // pred_check_branch
      %75 = sbr.rel (0) target = $region33
    $region32: #{tpu_custom_call.1} parent=1 // pred_region
      %77 = vsyncadd [#allocation9], 0
      %s78 = sshll.u32 %s7, 4
      %s79 = int_to_ptr.hbm [resolvable:$true] %s78
      %s80 = sshll.u32 [#allocation10], 4
      %s81 = int_to_ptr.vmem [resolvable:$true] %s80
      %86 = dma.hbm_to_vmem [thread:$0]  %s79, 256, %s81, [#allocation9], 64, 64, 4
    $region33: #{tpu_custom_call.1} parent=1 // pred_fallthru
      _
    // Predicated region
    $region34: #{tpu_custom_call.1} parent=1 // pred_check
      _
    $region35: #{tpu_custom_call.1} parent=1 // pred_check_branch
      %88 = sbr.rel (0) target = $region37
    $region36: #{tpu_custom_call.1} parent=1 // pred_region
      _
    $region37: #{tpu_custom_call.1} parent=1 // pred_fallthru
      _
    // Predicated region
    $region38: #{tpu_custom_call.1} parent=1 // pred_check
      _
    $region39: #{tpu_custom_call.1} parent=1 // pred_check_branch
      %90 = sbr.rel (0) target = $region41
    $region40: #{tpu_custom_call.1} parent=1 // pred_region
      %92 = dma.done [#allocation3], 128
    $region41: #{tpu_custom_call.1} parent=1 // pred_fallthru
      _
    // Predicated region
    $region42: #{tpu_custom_call.1} parent=1 // pred_check
      _
    $region43: #{tpu_custom_call.1} parent=1 // pred_check_branch
      %94 = sbr.rel (0) target = $region45
    $region44: #{tpu_custom_call.1} parent=1 // pred_region
      %96 = dma.done [#allocation6], 128
    $region45: #{tpu_custom_call.1} parent=1 // pred_fallthru
      _
    // Predicated region
    $region46: #{tpu_custom_call.1} parent=1 // pred_check
      _
    $region47: #{tpu_custom_call.1} parent=1 // pred_check_branch
      %98 = sbr.rel (0) target = $region49
    $region48: #{tpu_custom_call.1} parent=1 // pred_region
      %100 = dma.done [#allocation6], 256
    $region49: #{tpu_custom_call.1} parent=1 // pred_fallthru
      _
    // Predicated region
    $region50: #{tpu_custom_call.1} parent=1 // pred_check
      _
    $region51: #{tpu_custom_call.1} parent=1 // pred_check_branch
      %102 = sbr.rel (0) target = $region53
    $region52: #{tpu_custom_call.1} parent=1 // pred_region
      %104 = dma.done [#allocation9], 256
    $region53: #{tpu_custom_call.1} parent=1 // pred_fallthru
      _
    // Predicated region
    $region54: #{tpu_custom_call.1} parent=1 // pred_check
      _
    $region55: #{tpu_custom_call.1} parent=1 // pred_check_branch
      %106 = sbr.rel (0) target = $region57
    $region56: #{tpu_custom_call.1} parent=1 // pred_region
      %108 = dma.done [#allocation9], 256
    $region57: #{tpu_custom_call.1} parent=1 // pred_fallthru
      _
    %v110 = vld [vmem:[#allocation2] sm:$0xff]
    %v111 = vpack.c.bf16 %v110, %v110
    %v112 = vld [vmem:[#allocation5] sm:$0xf]
    %v113 = vld [vmem:[#allocation5 + $0x4] sm:$0xf]
    %v114 = vld [vmem:[%s2] sm:$0x1]
    %v116 = vperm.slane %v114, 0
    %v120 = vunpack.c.l.b16 %v112
    %v121 = vunpack.c.l.b16 %v113
    %v122 = vpack.c.b16 %v121, %v120
    %vm124 = vcmask 130048
    %v126 = vsel %vm124, %v111, 0
    %128 = vmatpush.bf16.msra.mxu0 0
    %129 = vmatpush.bf16.msra.mxu0 0
    %130 = vmatpush.bf16.msra.mxu0 0
    %131 = vmatpush.bf16.msra.mxu0 0
    %132 = vmatpush.bf16.msra.mxu0 0
    %133 = vmatpush.bf16.msra.mxu0 0
    %134 = vmatpush.bf16.msra.mxu0 0
    %135 = vmatpush.bf16.msra.mxu0 %v122
    %136 = vmatmul.bf16.gmra.mxu0 %v126
    %v137 = vpop.f32.mrf.mxu0
    %v138 = vadd.f32 %v116, %v137
    %v139 = vpop.f32.mrf.mxu0
    %140 = vdwg.mxu0
    %v141 = vxor.u32 %v138, 2147483648
    %v142 = vmul.f32 %v141, 1.442695
    %v143 = vpow.pop %v142
    %v144 = vadd.f32 %v143, 1.0
    %v145 = vrcp.pop %v144
    %v146 = vmul.f32 %v144, %v145
    %v147 = vsub.f32 1.0, %v146
    %v148 = vmul.f32 %v145, %v147
    %v149 = vadd.f32 %v145, %v148
    %vm150 = vweird.f32 %v144
    %vm151 = vweird.f32 %v145
    %vm152 = vmor %vm150, %vm151
    %v153 = vsel %vm152, %v145, %v149
    %v154 = vand.u32 2147483647, %v144
    %vm155 = vcmp.eq.f32.partialorder %v154, 8.507059e+37
    %v156 = vand.u32 %v144, 2147483648
    %v157 = vor.u32 1.1754944e-38, %v156
    %v158 = vsel %vm155, %v157, %v153
    %v159 = vmul.f32 1.0, %v158
    %v160 = vmul.f32 %v138, %v159
    %v161 = vpack.c.bf16 %v160, %v160
    %v162 = vld [vmem:[#allocation7] sm:$0xf]
    %v163 = vld [vmem:[#allocation7 + $0x4] sm:$0xf]
    %v164 = vld [vmem:[#allocation7 + $0x8] sm:$0xf]
    %v165 = vld [vmem:[#allocation7 + $0xc] sm:$0xf]
    %v166 = vld [vmem:[%s4] sm:$0x1]
    %v168 = vperm.slane %v166, 0
    %v174 = vunpack.c.l.b16 %v162
    %v175 = vunpack.c.l.b16 %v163
    %v176 = vunpack.c.l.b16 %v164
    %v177 = vunpack.c.l.b16 %v165
    %v178 = vpack.c.b16 %v175, %v174
    %v179 = vpack.c.b16 %v177, %v176
    %vm182 = vcmask 261120
    %v184 = vsel %vm182, %v161, 0
    %186 = vmatpush.bf16.msra.mxu0 0
    %187 = vmatpush.bf16.msra.mxu0 0
    %188 = vmatpush.bf16.msra.mxu0 0
    %189 = vmatpush.bf16.msra.mxu0 0
    %190 = vmatpush.bf16.msra.mxu0 0
    %191 = vmatpush.bf16.msra.mxu0 0
    %192 = vmatpush.bf16.msra.mxu0 %v179
    %193 = vmatpush.bf16.msra.mxu0 %v178
    %194 = vmatmul.bf16.gmra.mxu0 %v184
    %v195 = vpop.f32.mrf.mxu0
    %v196 = vadd.f32 %v168, %v195
    %v197 = vpop.f32.mrf.mxu0
    %198 = vdwg.mxu0
    %v199 = vxor.u32 %v196, 2147483648
    %v200 = vmul.f32 %v199, 1.442695
    %v201 = vpow.pop %v200
    %v202 = vadd.f32 %v201, 1.0
    %v203 = vrcp.pop %v202
    %v204 = vmul.f32 %v202, %v203
    %v205 = vsub.f32 1.0, %v204
    %v206 = vmul.f32 %v203, %v205
    %v207 = vadd.f32 %v203, %v206
    %vm208 = vweird.f32 %v202
    %vm209 = vweird.f32 %v203
    %vm210 = vmor %vm208, %vm209
    %v211 = vsel %vm210, %v203, %v207
    %v212 = vand.u32 2147483647, %v202
    %vm213 = vcmp.eq.f32.partialorder %v212, 8.507059e+37
    %v214 = vand.u32 %v202, 2147483648
    %v215 = vor.u32 1.1754944e-38, %v214
    %v216 = vsel %vm213, %v215, %v211
    %v217 = vmul.f32 1.0, %v216
    %v218 = vmul.f32 %v196, %v217
    %v219 = vpack.c.bf16 %v218, %v218
    %v220 = vld [vmem:[#allocation8] sm:$0xf]
    %v221 = vld [vmem:[#allocation8 + $0x4] sm:$0xf]
    %v222 = vld [vmem:[#allocation8 + $0x8] sm:$0xf]
    %v223 = vld [vmem:[#allocation8 + $0xc] sm:$0xf]
    %v224 = vld [vmem:[%s6] sm:$0x1]
    %v226 = vperm.slane %v224, 0
    %v232 = vunpack.c.l.b16 %v220
    %v233 = vunpack.c.l.b16 %v221
    %v234 = vunpack.c.l.b16 %v222
    %v235 = vunpack.c.l.b16 %v223
    %v236 = vpack.c.b16 %v233, %v232
    %v237 = vpack.c.b16 %v235, %v234
    %v241 = vsel %vm182, %v219, 0
    %243 = vmatpush.bf16.msra.mxu0 0
    %244 = vmatpush.bf16.msra.mxu0 0
    %245 = vmatpush.bf16.msra.mxu0 0
    %246 = vmatpush.bf16.msra.mxu0 0
    %247 = vmatpush.bf16.msra.mxu0 0
    %248 = vmatpush.bf16.msra.mxu0 0
    %249 = vmatpush.bf16.msra.mxu0 %v237
    %250 = vmatpush.bf16.msra.mxu0 %v236
    %251 = vmatmul.bf16.gmra.mxu0 %v241
    %v252 = vpop.f32.mrf.mxu0
    %v253 = vadd.f32 %v226, %v252
    %v254 = vpop.f32.mrf.mxu0
    %255 = vdwg.mxu0
    %v256 = vxor.u32 %v253, 2147483648
    %v257 = vmul.f32 %v256, 1.442695
    %v258 = vpow.pop %v257
    %v259 = vadd.f32 %v258, 1.0
    %v260 = vrcp.pop %v259
    %v261 = vmul.f32 %v259, %v260
    %v262 = vsub.f32 1.0, %v261
    %v263 = vmul.f32 %v260, %v262
    %v264 = vadd.f32 %v260, %v263
    %vm265 = vweird.f32 %v259
    %vm266 = vweird.f32 %v260
    %vm267 = vmor %vm265, %vm266
    %v268 = vsel %vm267, %v260, %v264
    %v269 = vand.u32 2147483647, %v259
    %vm270 = vcmp.eq.f32.partialorder %v269, 8.507059e+37
    %v271 = vand.u32 %v259, 2147483648
    %v272 = vor.u32 1.1754944e-38, %v271
    %v273 = vsel %vm270, %v272, %v268
    %v274 = vmul.f32 1.0, %v273
    %v275 = vmul.f32 %v253, %v274
    %v276 = vpack.c.bf16 %v275, %v275
    %v277 = vld [vmem:[#allocation10] sm:$0xf]
    %v278 = vld [vmem:[#allocation10 + $0x4] sm:$0xf]
    %v279 = vld [vmem:[#allocation10 + $0x8] sm:$0xf]
    %v280 = vld [vmem:[#allocation10 + $0xc] sm:$0xf]
    %v281 = vld [vmem:[%s8] sm:$0x1]
    %v283 = vperm.slane %v281, 0
    %v289 = vunpack.c.l.b16 %v277
    %v290 = vunpack.c.l.b16 %v278
    %v291 = vunpack.c.l.b16 %v279
    %v292 = vunpack.c.l.b16 %v280
    %v293 = vpack.c.b16 %v290, %v289
    %v294 = vpack.c.b16 %v292, %v291
    %v298 = vsel %vm182, %v276, 0
    %300 = vmatpush.bf16.msra.mxu0 0
    %301 = vmatpush.bf16.msra.mxu0 0
    %302 = vmatpush.bf16.msra.mxu0 0
    %303 = vmatpush.bf16.msra.mxu0 0
    %304 = vmatpush.bf16.msra.mxu0 0
    %305 = vmatpush.bf16.msra.mxu0 0
    %306 = vmatpush.bf16.msra.mxu0 %v294
    %307 = vmatpush.bf16.msra.mxu0 %v293
    %308 = vmatmul.bf16.gmra.mxu0 %v298
    %v309 = vpop.f32.mrf.mxu0
    %v310 = vadd.f32 %v283, %v309
    %v311 = vpop.f32.mrf.mxu0
    %312 = vdwg.mxu0
    %v313 = vlaneseq
    %v314 = vand.u32 %v313, 127
    %vm315 = vcmp.lt.s32.totalorder %v314, 8
    %v316 = vsel %vm315, %v310, -inf
    %317 = vmax.xlane.f32.xlu0 %v316
    %v318 = vpop.xlane.xlu0 %317
    %v319 = vsub.f32 %v316, %v318
    %v320 = vmul.f32 %v319, 1.442695
    %v321 = vpow.pop %v320
    %322 = vadd.xlane.f32.xlu0 %v321
    %v323 = vpop.xlane.xlu0 %322
    %v324 = vlog2.pop %v323
    %v325 = vmul.f32 %v324, 0.6931472
    %v326 = vadd.f32 %v318, %v325
    %327 = vst [vmem:[#allocation11] sm:$0xff] %v310
    %v328 = vsub.f32 %v310, %v326
    %329 = vst [vmem:[#allocation11 + $0x8] sm:$0xff] %v328
    // Predicated region
    $region58: #{tpu_custom_call.1} parent=1 // pred_check
      _
    $region59: #{tpu_custom_call.1} parent=1 // pred_check_branch
      %331 = sbr.rel (0) target = $region61
    $region60: #{tpu_custom_call.1} parent=1 // pred_region
      %333 = vsyncadd [#allocation4], 0
      %s335 = sshll.u32 [#allocation11], 4
      %s336 = int_to_ptr.vmem [resolvable:$true] %s335
      %s337 = sshll.u32 %s9, 4
      %s338 = int_to_ptr.hbm [resolvable:$true] %s337
      %340 = dma.vmem_to_hbm [thread:$0]  %s336, 256, %s338, [#allocation4]
    $region61: #{tpu_custom_call.1} parent=1 // pred_fallthru
      _
    // Predicated region
    $region62: #{tpu_custom_call.1} parent=1 // pred_check
      _
    $region63: #{tpu_custom_call.1} parent=1 // pred_check_branch
      %342 = sbr.rel (0) target = $region65
    $region64: #{tpu_custom_call.1} parent=1 // pred_region
      %344 = dma.done [#allocation4], 256
    $region65: #{tpu_custom_call.1} parent=1 // pred_fallthru
      _
    %345 = vsyncpa [#allocation3], 1
    %346 = vsyncpa [#allocation6], 1
    %347 = vsyncpa [#allocation9], 1
    %348 = vsyncpa [#allocation4], 1

</llo_original>
